<compile_context>
chip_gen: v7x
topology: tpu7x:2x2x1
jax: 0.10.0
libtpu: 0.0.40
codegen_flags: <defaults>
</compile_context>

<pallas_src>
import jax
import jax.numpy as jnp
from jax import lax
from jax.experimental import pallas as pl
from jax.experimental.pallas import tpu as pltpu


# ----------------------------------------------------------------------------
# in-kernel helpers
# ----------------------------------------------------------------------------
def _snake_hoisted(x, alpha, approx):
    """Snake: x + sin(alpha*x)^2 / (alpha + 1e-9), denominator hoisted to a
    single per-channel reciprocal instead of a full-tile divide."""
    inv = pl.reciprocal(alpha + 1e-9, approx=approx)
    s = jnp.sin(alpha * x)
    return x + s * s * inv


def _shifted(g, offset, T, row):
    """y[t] = g[t + offset] with zeros outside [0, T).
    Pad-free: sublane roll (XLU) + edge mask instead of jnp.pad + slice."""
    if offset == 0:
        return g
    if abs(offset) >= T:
        return jnp.zeros_like(g)
    r = pltpu.roll(g, (-offset) % T, axis=0)
    if offset > 0:
        return jnp.where(row < T - offset, r, 0.0)
    return jnp.where(row >= -offset, r, 0.0)


# ----------------------------------------------------------------------------
# Pallas kernels
# ----------------------------------------------------------------------------
def make_head_kernel(half, mm_dtype, approx):
    """Snake(in_ch) + all ConvTranspose1d taps as ONE MXU matmul.

    x_ref : (1, L, Cin)   a_ref : (1, Cin)   w_ref : (Cin, 2*half)
    oa_ref / ob_ref : (1, L, half)  -- taps [0, scale) / [scale, 2*scale),
    i.e. the two phase slabs of the transposed conv (half = scale * Cout).
    """

    def kernel(x_ref, a_ref, w_ref, oa_ref, ob_ref):
        h = _snake_hoisted(x_ref[0], a_ref[...], approx)          # (L, Cin)
        c = jnp.dot(h.astype(mm_dtype), w_ref[...],
                    preferred_element_type=jnp.float32)           # (L, 2*half)
        oa_ref[0] = c[:, :half].astype(oa_ref.dtype)
        ob_ref[0] = c[:, half:].astype(ob_ref.dtype)

    return kernel


def make_stack_kernel(T, dilations, scale, ksize, mm_dtype, approx):
    """Fused: ConvTranspose1d overlap-add (+ crop scale//2) followed by the
    FULL DBlock_DS stack, activation resident in VMEM.

    ca_ref/cb_ref : (1, T, C)   phase slabs from the head
    a1_ref : (NL,1,C)  dw_ref : (NL,ksize,C)  w1_ref : (NL,C,H)
    a2_ref : (NL,1,H)  w2_ref : (NL,H,C)      o_ref  : (1,T,C)
    """
    p = scale // 2
    half_k = (ksize - 1) // 2
    NL = len(dilations)

    def kernel(ca_ref, cb_ref, a1_ref, dw_ref, w1_ref, a2_ref, w2_ref, o_ref):
        row = lax.broadcasted_iota(jnp.int32, (T, 1), 0)
        # --- fused ConvTranspose1d overlap-add, cropped by padding = scale//2:
        #     out[t] = cA[t + p] (valid while t + p < T) + cB[t - p] (t >= p)
        h = _shifted(ca_ref[0], p, T, row) + _shifted(cb_ref[0], -p, T, row)

        # --- DBlock_DS stack, unrolled (small fixed count, static dilations)
        for li in range(NL):
            d = dilations[li]
            g = _snake_hoisted(h, a1_ref[li], approx)             # (T, C)
            dw = dw_ref[li]                                       # (ksize, C)
            # dilated depthwise conv, 'same' zero padding, pad-free
            acc = g * dw[half_k:half_k + 1, :]
            for j in range(ksize):
                if j == half_k:
                    continue
                acc = acc + _shifted(g, (j - half_k) * d, T, row) * dw[j:j + 1, :]
            u = jnp.dot(acc.astype(mm_dtype), w1_ref[li],
                        preferred_element_type=jnp.float32)       # (T, H)
            u = _snake_hoisted(u, a2_ref[li], approx)
            v = jnp.dot(u.astype(mm_dtype), w2_ref[li],
                        preferred_element_type=jnp.float32)       # (T, C)
            h = h + v                                             # residual
        o_ref[0] = h.astype(o_ref.dtype)

    return kernel


# ----------------------------------------------------------------------------
# pallas_call wrappers
# ----------------------------------------------------------------------------
def decoder_stage_forward(x_blc, params, scale, *,
                          mm_dtype=jnp.float32, approx_recip=False):
    """DecoderStage forward.  x_blc: (B, L, in_ch), channels-last."""
    B, L, Cin = x_blc.shape
    s = scale
    K = 2 * s
    # TODO(synk): odd `scale` would need the un-fused overlap-add fallback.
    assert s % 2 == 0, "fused overlap-add path assumes even scale"

    head_w = params["head_w"]                         # (K, Cin, Cout)
    Cout = head_w.shape[-1]
    T = L * s
    half = s * Cout

    # (K, Cin, Cout) -> (Cin, K*Cout) once, so the head is a single matmul.
    w2d = jnp.transpose(head_w, (1, 0, 2)).reshape(Cin, K * Cout).astype(mm_dtype)

    outA, outB = pl.pallas_call(
        make_head_kernel(half, mm_dtype, approx_recip),
        out_shape=(jax.ShapeDtypeStruct((B, L, half), jnp.float32),
                   jax.ShapeDtypeStruct((B, L, half), jnp.float32)),
        grid=(B,),
        in_specs=[
            pl.BlockSpec((1, L, Cin), lambda b: (b, 0, 0)),
            pl.BlockSpec((1, Cin), lambda b: (0, 0)),
            pl.BlockSpec((Cin, K * Cout), lambda b: (0, 0)),
        ],
        out_specs=(pl.BlockSpec((1, L, half), lambda b: (b, 0, 0)),
                   pl.BlockSpec((1, L, half), lambda b: (b, 0, 0))),
        compiler_params=pltpu.CompilerParams(dimension_semantics=("parallel",)),
    )(x_blc, params["head_alpha"].reshape(1, Cin), w2d)

    # Metadata-only reshapes: (B, L, s*Cout) and (B, L*s, Cout) have identical
    # row-major layouts, so no extra HBM copy is generated here.
    cA = outA.reshape(B, T, Cout)
    cB = outB.reshape(B, T, Cout)

    # Stack every DBlock_DS layer's params so ONE pallas_call runs the whole
    # residual stack with the activation resident in VMEM.
    layers = [ly for block in params["blocks"] for ly in block]
    NL = len(layers)
    dilations = tuple(int(ly["dilation"]) for ly in layers)
    ksize = layers[0]["dw"].shape[0]
    H = layers[0]["w1"].shape[1]
    a1s = jnp.stack([ly["alpha1"] for ly in layers]).reshape(NL, 1, Cout)
    dws = jnp.stack([ly["dw"] for ly in layers])                      # (NL,ks,C)
    w1s = jnp.stack([ly["w1"] for ly in layers]).astype(mm_dtype)     # (NL,C,H)
    a2s = jnp.stack([ly["alpha2"] for ly in layers]).reshape(NL, 1, H)
    w2s = jnp.stack([ly["w2"] for ly in layers]).astype(mm_dtype)     # (NL,H,C)

    out = pl.pallas_call(
        make_stack_kernel(T, dilations, s, ksize, mm_dtype, approx_recip),
        out_shape=jax.ShapeDtypeStruct((B, T, Cout), jnp.float32),
        grid=(B,),
        in_specs=[
            pl.BlockSpec((1, T, Cout), lambda b: (b, 0, 0)),
            pl.BlockSpec((1, T, Cout), lambda b: (b, 0, 0)),
            pl.BlockSpec((NL, 1, Cout), lambda b: (0, 0, 0)),
            pl.BlockSpec((NL, ksize, Cout), lambda b: (0, 0, 0)),
            pl.BlockSpec((NL, Cout, H), lambda b: (0, 0, 0)),
            pl.BlockSpec((NL, 1, H), lambda b: (0, 0, 0)),
            pl.BlockSpec((NL, H, Cout), lambda b: (0, 0, 0)),
        ],
        out_specs=pl.BlockSpec((1, T, Cout), lambda b: (b, 0, 0)),
        compiler_params=pltpu.CompilerParams(dimension_semantics=("parallel",)),
    )(cA, cB, a1s, dws, w1s, a2s, w2s)
    return out


# ----------------------------------------------------------------------------
# Pure-JAX reference (direct PyTorch-definition math) for validation
# ----------------------------------------------------------------------------
def _snake_ref(x, a):
    return x + jnp.sin(a * x) ** 2 / (a + 1e-9)


def _conv_transpose_ref(x, w, scale):
    B, L, Cin = x.shape
    K, _, Cout = w.shape
    p = scale // 2
    Lfull = (L - 1) * scale + K
    y = jnp.zeros((B, Lfull, Cout), jnp.float32)
    for i in range(L):
        for k in range(K):
            y = y.at[:, i * scale + k, :].add(x[:, i, :] @ w[k])
    return y[:, p:p + (Lfull - 2 * p), :]


def _dblock_ref(x, layer):
    d = int(layer["dilation"])
    dw, w1, w2 = layer["dw"], layer["w1"], layer["w2"]
    T = x.shape[1]
    h = _snake_ref(x, layer["alpha1"])
    pad = d * (dw.shape[0] - 1) // 2
    hp = jnp.pad(h, ((0, 0), (pad, pad), (0, 0)))
    acc = sum(hp[:, j * d:j * d + T, :] * dw[j] for j in range(dw.shape[0]))
    u = _snake_ref(acc @ w1, layer["alpha2"])
    return x + u @ w2


def decoder_stage_ref(x_blc, params, scale):
    h = _snake_ref(x_blc, params["head_alpha"])
    h = _conv_transpose_ref(h, params["head_w"], scale)
    for block in params["blocks"]:
        for layer in block:
            h = _dblock_ref(h, layer)
    return h


# ----------------------------------------------------------------------------
# Deterministic parameter init
# ----------------------------------------------------------------------------
def init_params(key, in_ch, out_ch, scale, expansion, num_blocks, layers_per_block):
    K = 2 * scale
    H = int(out_ch * expansion)
    key, kw = jax.random.split(key)
    params = {
        "head_alpha": jnp.ones((in_ch,), jnp.float32),
        # ConvTranspose1d weight, stored as (kernel, in_ch, out_ch)
        "head_w": jax.random.normal(kw, (K, in_ch, out_ch), jnp.float32)
        * (1.0 / (in_ch * K) ** 0.5),
        "blocks": [],
    }
    for _ in range(num_blocks):
        block = []
        for li in range(layers_per_block):
            key, k1, k2, k3 = jax.random.split(key, 4)
            block.append({
                "dilation": 3 ** li,
                "alpha1": jnp.ones((out_ch,), jnp.float32),
                "dw": jax.random.normal(k1, (3, out_ch), jnp.float32) * (1.0 / 3 ** 0.5),
                "w1": jax.random.normal(k2, (out_ch, H), jnp.float32) * (1.0 / out_ch ** 0.5),
                "alpha2": jnp.ones((H,), jnp.float32),
                "w2": jax.random.normal(k3, (H, out_ch), jnp.float32) * (1.0 / H ** 0.5),
            })
        params["blocks"].append(block)
    return params


# ----------------------------------------------------------------------------
if __name__ == "__main__":
    # DecoderStage(in_channels=8, out_channels=16, scale=2,
    #              ds_expansion_factor=2.0, num_blocks=2, layers_per_block=2)
    B, IN_CH, OUT_CH, L = 2, 8, 16, 16
    SCALE, EXP, NUM_BLOCKS, LAYERS = 2, 2.0, 2, 2

    key = jax.random.PRNGKey(0)
    key, kx = jax.random.split(key)
    x_ncl = jax.random.normal(kx, (B, IN_CH, L), jnp.float32)   # PyTorch (B, C, L)
    x_blc = jnp.transpose(x_ncl, (0, 2, 1))                     # kernel layout (B, L, C)

    params = init_params(key, IN_CH, OUT_CH, SCALE, EXP, NUM_BLOCKS, LAYERS)

    ref = decoder_stage_ref(x_blc, params, SCALE)

    # Exact path (f32 matmuls, exact hoisted reciprocal): parity with reference.
    out = decoder_stage_forward(x_blc, params, SCALE)
    out = jax.block_until_ready(out)
    assert out.shape == (B, L * SCALE, OUT_CH), out.shape
    assert bool(jnp.all(jnp.isfinite(out)))
    assert bool(jnp.allclose(out, ref, rtol=1e-4, atol=1e-4)), (
        float(jnp.max(jnp.abs(out - ref))))

    # Fast path (bf16 MXU operands + approx EUP reciprocal): loose sanity check.
    out_fast = decoder_stage_forward(x_blc, params, SCALE,
                                     mm_dtype=jnp.bfloat16, approx_recip=True)
    out_fast = jax.block_until_ready(out_fast)
    assert bool(jnp.all(jnp.isfinite(out_fast)))
    rel_l2 = float(jnp.linalg.norm(out_fast - ref) / (jnp.linalg.norm(ref) + 1e-6))
    assert rel_l2 < 0.1, rel_l2

    print("KERNEL_OK")
</pallas_src>

<mosaic_0001>
module attributes {stable_mosaic.version = 11 : i64} {
  func.func @kernel(%arg0: i32, %arg1: memref<1x16x8xf32, #tpu.memory_space<vmem>>, %arg2: memref<1x8xf32, #tpu.memory_space<vmem>>, %arg3: memref<8x64xf32, #tpu.memory_space<vmem>>, %arg4: memref<1x16x32xf32, #tpu.memory_space<vmem>>, %arg5: memref<1x16x32xf32, #tpu.memory_space<vmem>>) attributes {dimension_semantics = [#tpu.dimension_semantics<parallel>], iteration_bounds = array<i64: 2>, scalar_prefetch = 0 : i64, scratch_operands = 0 : i64, tpu.core_type = #tpu.core_type<tc>, window_params = [{transform_indices = @transform_0, window_bounds = array<i64: 1, 16, 8>}, {pipeline_mode = #tpu.pipeline_mode<synchronous>, transform_indices = @transform_1, window_bounds = array<i64: 1, 8>}, {pipeline_mode = #tpu.pipeline_mode<synchronous>, transform_indices = @transform_2, window_bounds = array<i64: 8, 64>}, {transform_indices = @transform_3, window_bounds = array<i64: 1, 16, 32>}, {transform_indices = @transform_4, window_bounds = array<i64: 1, 16, 32>}]} {
    %c0 = arith.constant 0 : index
    %c0_0 = arith.constant 0 : index
    %c0_1 = arith.constant 0 : index
    %0 = vector.load %arg1[%c0, %c0_0, %c0_1] : memref<1x16x8xf32, #tpu.memory_space<vmem>>, vector<1x16x8xf32>
    %1 = vector.shape_cast %0 : vector<1x16x8xf32> to vector<16x8xf32>
    %c0_2 = arith.constant 0 : index
    %c0_3 = arith.constant 0 : index
    %2 = vector.load %arg2[%c0_2, %c0_3] : memref<1x8xf32, #tpu.memory_space<vmem>>, vector<1x8xf32>
    %cst = arith.constant 9.99999971E-10 : f32
    %3 = vector.broadcast %cst : f32 to vector<1x8xf32>
    %4 = arith.addf %2, %3 : vector<1x8xf32>
    %5 = tpu.reciprocal %4 : vector<1x8xf32> -> vector<1x8xf32>
    %6 = vector.broadcast %2 : vector<1x8xf32> to vector<16x8xf32>
    %7 = arith.mulf %6, %1 : vector<16x8xf32>
    %8 = math.sin %7 : vector<16x8xf32>
    %9 = arith.mulf %8, %8 : vector<16x8xf32>
    %10 = vector.broadcast %5 : vector<1x8xf32> to vector<16x8xf32>
    %11 = arith.mulf %9, %10 : vector<16x8xf32>
    %12 = arith.addf %1, %11 : vector<16x8xf32>
    %c0_4 = arith.constant 0 : index
    %c0_5 = arith.constant 0 : index
    %13 = vector.load %arg3[%c0_4, %c0_5] : memref<8x64xf32, #tpu.memory_space<vmem>>, vector<8x64xf32>
    %cst_6 = arith.constant dense<0.000000e+00> : vector<16x64xf32>
    %14 = tpu.matmul %12, %13, %cst_6 {dimension_numbers = #tpu.dot_dimension_numbers<[1], [0], [0], [1], [0, 0, 1, 1], [], []>} : vector<16x8xf32>, vector<8x64xf32>, vector<16x64xf32> -> vector<16x64xf32>
    %15 = vector.extract_strided_slice %14 {offsets = [0, 0], sizes = [16, 32], strides = [1, 1]} : vector<16x64xf32> to vector<16x32xf32>
    %c0_7 = arith.constant 0 : index
    %c0_8 = arith.constant 0 : index
    %c0_9 = arith.constant 0 : index
    %16 = vector.load %arg4[%c0_7, %c0_8, %c0_9] : memref<1x16x32xf32, #tpu.memory_space<vmem>>, vector<1x16x32xf32>
    %17 = vector.shape_cast %16 : vector<1x16x32xf32> to vector<16x32xf32>
    %18 = vector.shape_cast %15 : vector<16x32xf32> to vector<1x16x32xf32>
    tpu.vector_store %arg4[%c0_7, %c0_8, %c0_9], %18 {strides = array<i32>} : memref<1x16x32xf32, #tpu.memory_space<vmem>>, vector<1x16x32xf32>,
    %19 = vector.extract_strided_slice %14 {offsets = [0, 32], sizes = [16, 32], strides = [1, 1]} : vector<16x64xf32> to vector<16x32xf32>
    %c0_10 = arith.constant 0 : index
    %c0_11 = arith.constant 0 : index
    %c0_12 = arith.constant 0 : index
    %20 = vector.load %arg5[%c0_10, %c0_11, %c0_12] : memref<1x16x32xf32, #tpu.memory_space<vmem>>, vector<1x16x32xf32>
    %21 = vector.shape_cast %20 : vector<1x16x32xf32> to vector<16x32xf32>
    %22 = vector.shape_cast %19 : vector<16x32xf32> to vector<1x16x32xf32>
    tpu.vector_store %arg5[%c0_10, %c0_11, %c0_12], %22 {strides = array<i32>} : memref<1x16x32xf32, #tpu.memory_space<vmem>>, vector<1x16x32xf32>,
    return
  }
  func.func @transform_0(%arg0: i32) -> (i32, i32, i32) {
    %c0_i32 = arith.constant 0 : i32
    %c0_i32_0 = arith.constant 0 : i32
    %c0_i32_1 = arith.constant 0 : i32
    return %arg0, %c0_i32, %c0_i32_0 : i32, i32, i32
  }
  func.func @transform_1(%arg0: i32) -> (i32, i32) {
    %c0_i32 = arith.constant 0 : i32
    %c0_i32_0 = arith.constant 0 : i32
    %c0_i32_1 = arith.constant 0 : i32
    return %c0_i32, %c0_i32_0 : i32, i32
  }
  func.func @transform_2(%arg0: i32) -> (i32, i32) {
    %c0_i32 = arith.constant 0 : i32
    %c0_i32_0 = arith.constant 0 : i32
    %c0_i32_1 = arith.constant 0 : i32
    return %c0_i32, %c0_i32_0 : i32, i32
  }
  func.func @transform_3(%arg0: i32) -> (i32, i32, i32) {
    %c0_i32 = arith.constant 0 : i32
    %c0_i32_0 = arith.constant 0 : i32
    %c0_i32_1 = arith.constant 0 : i32
    return %arg0, %c0_i32, %c0_i32_0 : i32, i32, i32
  }
  func.func @transform_4(%arg0: i32) -> (i32, i32, i32) {
    %c0_i32 = arith.constant 0 : i32
    %c0_i32_0 = arith.constant 0 : i32
    %c0_i32_1 = arith.constant 0 : i32
    return %arg0, %c0_i32, %c0_i32_0 : i32, i32, i32
  }
}

</mosaic_0001>

<llo_original>
// kernel: tpu_custom_call.1
$region0: #{tpu_custom_call.1}
  #allocation0 [shape = 'u32[]', space=smem, size = 0x4, offset = 0x4, fixed_abs, tag = 'smem constant byte address 0x4 - core index']
  #allocation1 [shape = 'u32[144,128]{1,0:T(1,128)}', space=vmem, size = 0x12000, scoped, tag = 'internal scratch']
  %s0 = inlined_call_operand.vmem [shape: f32[2,16,8], index: 0, kind: input, shape index: {}]
  %s1 = inlined_call_operand.vmem [shape: f32[1,8], index: 1, kind: input, shape index: {}]
  %s2 = inlined_call_operand.vmem [shape: f32[8,64], index: 2, kind: input, shape index: {}]
  %s3 = inlined_call_operand.hbm [shape: f32[2,16,32], index: 3, kind: output, shape index: {0}]
  %s4 = inlined_call_operand.hbm [shape: f32[2,16,32], index: 4, kind: output, shape index: {1}]
  %5 = xla_tuple %s3, %s4
  %s6 = sld [smem:[#allocation0]]
  $region53: #{tpu_custom_call.1} parent=0
    _
  %s8 = ssub.s32 1, %s6
  %s9 = scalar_select 0, %s8, %s6
  $region1: #{tpu_custom_call.1} parent=0
    #allocation2 [shape = 'u8[16384]{0}', space=vmem, size = 0x4000, scoped, tag = 'output window, operand 0']
    #allocation3 [shape = 's32[2]{0}', space=sflag, size = 0x8, scoped, tag = 'scoped memory for tpu_custom_call.1']
    #allocation4 [shape = 'u8[16384]{0}', space=vmem, size = 0x4000, scoped, tag = 'output window, operand 1']
    #allocation5 [shape = 's32[2]{0}', space=sflag, size = 0x8, scoped, tag = 'scoped memory for tpu_custom_call.1']
    %10 = vsyncpa [#allocation3], 0
    %s11 = scalar_lea.sflag [#allocation3], 1
    %12 = vsyncpa %s11, 0
    %13 = vsyncpa [#allocation5], 0
    %s14 = scalar_lea.sflag [#allocation5], 1
    %15 = vsyncpa %s14, 0
    loop: start=0, step=1, limit=4
    $region2: #{tpu_custom_call.1} parent=1 // loop_pre_header
      _
    $region3: #{tpu_custom_call.1} parent=1 // loop_header
      %s17 = sphi 0, %s21
      %p18 = scmp.ge.s32.totalorder %s17, 4
      %s27 = sphi 0, %s29
      %s30 = sphi 0, %s27
      %s31 = sphi 0, %s30
      %s47 = sphi 0, %s31
      %s51 = sphi 0, %s51
      %s53 = sphi 0, %s51
      %s54 = sphi 0, %s53
      %s68 = sphi 0, %s54
      %s72 = sphi 0, %s72
      %s74 = sphi 0, %s72
      %s75 = sphi 0, %s74
      %s89 = sphi 0, %s75
      %s95 = sphi 0, %s97
      %s98 = sphi 0, %s95
      %s99 = sphi 0, %s98
      %s115 = sphi 0, %s99
      %s121 = sphi 0, %s123
      %s124 = sphi 0, %s121
      %s125 = sphi 0, %s124
      %s141 = sphi 0, %s125
    $region4: #{tpu_custom_call.1} parent=1 // loop_header_branch
      %20 = sbr.rel (%p18) target = $region8
    $region5: #{tpu_custom_call.1} parent=1 // loop_body
      %s22 = ssub.s32 %s17, 1
      %s23 = ssub.s32 %s17, 2
      %s24 = sadd.s32 %s17, 1
      %s25 = ssub.s32 %s17, %s24
      %p26 = scmp.eq.s32.totalorder %s25, 0
      %s28 = sadd.s32 %s27, 1
      %s29 = scalar_select %p26, %s27, %s28
      %p32 = pneg %p26
      %p33 = scmp.eq.s32.totalorder %s17, 1
      %p34 = por %p32, %p33
      %p35 = scmp.ne.s32.totalorder %s27, %s30
      %p36 = scmp.eq.s32.totalorder %s17, 0
      %p37 = por %p35, %p36
      %p38 = scmp.ne.s32.totalorder %s27, %s30
      %p39 = scmp.eq.s32.totalorder %s22, 1
      %p40 = por %p38, %p39
      %p41 = scmp.ne.s32.totalorder %s30, %s31
      %p42 = scmp.eq.s32.totalorder %s22, 0
      %p43 = por %p41, %p42
      %p44 = scmp.ne.s32.totalorder %s30, %s31
      %p45 = scmp.eq.s32.totalorder %s23, 1
      %p46 = por %p44, %p45
      %p48 = scmp.ne.s32.totalorder %s31, %s47
      %p49 = scmp.eq.s32.totalorder %s23, 0
      %p50 = por %p48, %p49
      %s52 = sadd.s32 %s51, 1
      %p55 = scmp.eq.s32.totalorder %s17, 1
      %p56 = scmp.ne.s32.totalorder %s51, %s53
      %p57 = scmp.eq.s32.totalorder %s17, 0
      %p58 = por %p56, %p57
      %p59 = scmp.ne.s32.totalorder %s51, %s53
      %p60 = scmp.eq.s32.totalorder %s22, 1
      %p61 = por %p59, %p60
      %p62 = scmp.ne.s32.totalorder %s53, %s54
      %p63 = scmp.eq.s32.totalorder %s22, 0
      %p64 = por %p62, %p63
      %p65 = scmp.ne.s32.totalorder %s53, %s54
      %p66 = scmp.eq.s32.totalorder %s23, 1
      %p67 = por %p65, %p66
      %p69 = scmp.ne.s32.totalorder %s54, %s68
      %p70 = scmp.eq.s32.totalorder %s23, 0
      %p71 = por %p69, %p70
      %s73 = sadd.s32 %s72, 1
      %p76 = scmp.eq.s32.totalorder %s17, 1
      %p77 = scmp.ne.s32.totalorder %s72, %s74
      %p78 = scmp.eq.s32.totalorder %s17, 0
      %p79 = por %p77, %p78
      %p80 = scmp.ne.s32.totalorder %s72, %s74
      %p81 = scmp.eq.s32.totalorder %s22, 1
      %p82 = por %p80, %p81
      %p83 = scmp.ne.s32.totalorder %s74, %s75
      %p84 = scmp.eq.s32.totalorder %s22, 0
      %p85 = por %p83, %p84
      %p86 = scmp.ne.s32.totalorder %s74, %s75
      %p87 = scmp.eq.s32.totalorder %s23, 1
      %p88 = por %p86, %p87
      %p90 = scmp.ne.s32.totalorder %s75, %s89
      %p91 = scmp.eq.s32.totalorder %s23, 0
      %p92 = por %p90, %p91
      %s93 = ssub.s32 %s17, %s24
      %p94 = scmp.eq.s32.totalorder %s93, 0
      %s96 = sadd.s32 %s95, 1
      %s97 = scalar_select %p94, %s95, %s96
      %p100 = pneg %p94
      %p101 = scmp.eq.s32.totalorder %s17, 1
      %p102 = por %p100, %p101
      %p103 = scmp.ne.s32.totalorder %s95, %s98
      %p104 = scmp.eq.s32.totalorder %s17, 0
      %p105 = por %p103, %p104
      %p106 = scmp.ne.s32.totalorder %s95, %s98
      %p107 = scmp.eq.s32.totalorder %s22, 1
      %p108 = por %p106, %p107
      %p109 = scmp.ne.s32.totalorder %s98, %s99
      %p110 = scmp.eq.s32.totalorder %s22, 0
      %p111 = por %p109, %p110
      %p112 = scmp.ne.s32.totalorder %s98, %s99
      %p113 = scmp.eq.s32.totalorder %s23, 1
      %p114 = por %p112, %p113
      %p116 = scmp.ne.s32.totalorder %s99, %s115
      %p117 = scmp.eq.s32.totalorder %s23, 0
      %p118 = por %p116, %p117
      %s119 = ssub.s32 %s17, %s24
      %p120 = scmp.eq.s32.totalorder %s119, 0
      %s122 = sadd.s32 %s121, 1
      %s123 = scalar_select %p120, %s121, %s122
      %p126 = pneg %p120
      %p127 = scmp.eq.s32.totalorder %s17, 1
      %p128 = por %p126, %p127
      %p129 = scmp.ne.s32.totalorder %s121, %s124
      %p130 = scmp.eq.s32.totalorder %s17, 0
      %p131 = por %p129, %p130
      %p132 = scmp.ne.s32.totalorder %s121, %s124
      %p133 = scmp.eq.s32.totalorder %s22, 1
      %p134 = por %p132, %p133
      %p135 = scmp.ne.s32.totalorder %s124, %s125
      %p136 = scmp.eq.s32.totalorder %s22, 0
      %p137 = por %p135, %p136
      %p138 = scmp.ne.s32.totalorder %s124, %s125
      %p139 = scmp.eq.s32.totalorder %s23, 1
      %p140 = por %p138, %p139
      %p142 = scmp.ne.s32.totalorder %s125, %s141
      %p143 = scmp.eq.s32.totalorder %s23, 0
      %p144 = por %p142, %p143
      %p145 = scmp.le.s32.totalorder 1, %s17
      %p146 = scmp.lt.s32.totalorder %s17, 3
      %p147 = pnand %p145, %p146
      %p148 = pneg %p147
      // Predicated region
      $region9: #{tpu_custom_call.1} parent=5 // pred_check
        _
      $region10: #{tpu_custom_call.1} parent=5 // pred_check_branch
        %150 = sbr.rel (%p147) target = $region12
      $region11: #{tpu_custom_call.1} parent=5 // pred_region
        %s151 = ssub.s32 %s17, 1
        // Predicated region
        $region13: #{tpu_custom_call.1} parent=11 // pred_check
          %p152 = pneg %p64
        $region14: #{tpu_custom_call.1} parent=11 // pred_check_branch
          %154 = sbr.rel (%p152) target = $region16
        $region15: #{tpu_custom_call.1} parent=11 // pred_region
          _
        $region16: #{tpu_custom_call.1} parent=11 // pred_fallthru
          _
        // Predicated region
        $region17: #{tpu_custom_call.1} parent=11 // pred_check
          %p155 = pneg %p85
        $region18: #{tpu_custom_call.1} parent=11 // pred_check_branch
          %157 = sbr.rel (%p155) target = $region20
        $region19: #{tpu_custom_call.1} parent=11 // pred_region
          _
        $region20: #{tpu_custom_call.1} parent=11 // pred_fallthru
          _
      $region12: #{tpu_custom_call.1} parent=5 // pred_fallthru
        _
      %p158 = scmp.lt.s32.totalorder %s17, 2
      // Predicated region
      $region21: #{tpu_custom_call.1} parent=5 // pred_check
        %p159 = pneg %p158
      $region22: #{tpu_custom_call.1} parent=5 // pred_check_branch
        %161 = sbr.rel (%p159) target = $region24
      $region23: #{tpu_custom_call.1} parent=5 // pred_region
        // Predicated region
        $region25: #{tpu_custom_call.1} parent=23 // pred_check
          %p162 = pneg %p37
        $region26: #{tpu_custom_call.1} parent=23 // pred_check_branch
          %164 = sbr.rel (%p162) target = $region28
        $region27: #{tpu_custom_call.1} parent=23 // pred_region
          %p165 = scmp.lt.s32.totalorder %s17, 1
          %s166 = scalar_select %p165, %s17, 1
          %s167 = smul.addr %s166, 2
          %s168 = smul.addr %s167, 8
          %s169 = scalar_lea.vmem %s0, %s168
        $region28: #{tpu_custom_call.1} parent=23 // pred_fallthru
          _
      $region24: #{tpu_custom_call.1} parent=5 // pred_fallthru
        _
      %p170 = scmp.le.s32.totalorder 1, %s17
      %p171 = scmp.lt.s32.totalorder %s17, 3
      %p172 = pnand %p170, %p171
      %p173 = pneg %p172
      // Predicated region
      $region29: #{tpu_custom_call.1} parent=5 // pred_check
        _
      $region30: #{tpu_custom_call.1} parent=5 // pred_check_branch
        %175 = sbr.rel (%p172) target = $region32
      $region31: #{tpu_custom_call.1} parent=5 // pred_region
        %s176 = ssub.s32 %s17, 1
        %p177 = scmp.lt.s32.totalorder %s22, 1
        %s178 = scalar_select %p177, %s22, 1
        %s179 = smul.addr %s178, 2
        %s180 = smul.addr %s179, 8
        %s181 = scalar_lea.vmem %s0, %s180
        %p182 = pneg %p43
        %p183 = pneg %p40
        %p184 = pneg %p64
        %p185 = pneg %p61
        %p186 = pneg %p85
        %p187 = pneg %p82
        %p188 = pneg %p111
        %p189 = pneg %p108
        %s190 = sand.u32 %s98, 1
        %s191 = scalar_lea.sflag [#allocation3], %s190
        %s192 = sand.u32 %s98, 1
        %s193 = smul.addr %s192, 16
        %s194 = scalar_lea.vmem [#allocation2], %s193
        %p195 = pneg %p137
        %p196 = pneg %p134
        %s197 = sand.u32 %s124, 1
        %s198 = scalar_lea.sflag [#allocation5], %s197
        %s199 = sand.u32 %s124, 1
        %s200 = smul.addr %s199, 16
        %s201 = scalar_lea.vmem [#allocation4], %s200
        %p202 = scmp.lt.s32.totalorder %s22, 1
        %s203 = scalar_select %p202, %s22, 1
        %s204 = smul.addr %s203, 2
        %s205 = smul.addr %s204, 8
        %s206 = scalar_lea.vmem %s0, %s205
        %v207 = vld [vmem:[%s206] sm:$0xff]
        %v208 = vld [vmem:[%s206 + $0x8] sm:$0xff]
        %v209 = vld [vmem:[%s1] sm:$0x1]
        %v210 = vadd.f32 %v209, 1e-09
        %v211 = vrcp.pop %v210
        %v213 = vlaneseq
        %v214 = vshrl.u32 %v213, 7
        %v215 = vsub.s32 0, %v214
        %v216 = vrot.slane %v209, %v215
        %v218 = vmul.f32 %v216, %v207
        %v219 = vmul.f32 %v216, %v208
        %v220 = vand.u32 2147483647, %v218
        %vm221 = vcmp.le.f32.partialorder %v220, 0.7853982
        %vm222 = vcmp.lt.s32.totalorder %v218, 0
        %v223 = vand.u32 %v218, 2139095040
        %v224 = vshrl.u32 %v223, 23
        %v225 = vsub.s32 %v224, 127
        %v226 = vand.u32 2147483647, %v218
        %v227 = vand.u32 %v226, 8388607
        %v228 = vor.u32 %v227, 8388608
        %v229 = vsub.s32 0, %v228
        %v230 = vadd.s32 %v225, 1
        %vm231 = vcmp.gt.s32.totalorder %v230, 0
        %v232 = vsel %vm231, %v230, 0
        %v233 = vshrl.u32 %v232, 5
        %v234 = vand.u32 %v232, 31
        %v235 = vsub.s32 32, %v234
        %v236 = vshrl.u32 683565275, %v235
        %v237 = vshll.u32 683565275, %v234
        %v238 = vshrl.u32 2475754826, %v235
        %v239 = vor.u32 %v237, %v238
        %v240 = vshll.u32 2475754826, %v234
        %v241 = vshrl.u32 2131351028, %v235
        %v242 = vor.u32 %v240, %v241
        %v243 = vshll.u32 2131351028, %v234
        %v244 = vshrl.u32 2102212464, %v235
        %v245 = vor.u32 %v243, %v244
        %v246 = vshll.u32 2102212464, %v234
        %v247 = vshrl.u32 920167782, %v235
        %v248 = vor.u32 %v246, %v247
        %v249 = vshll.u32 920167782, %v234
        %v250 = vshrl.u32 1326507024, %v235
        %v251 = vor.u32 %v249, %v250
        %vm252 = vcmp.lt.s32.totalorder %v233, 1
        %vm253 = vcmp.lt.s32.totalorder %v233, 2
        %vm254 = vcmp.lt.s32.totalorder %v233, 3
        %vm255 = vcmp.lt.s32.totalorder %v233, 4
        %v256 = vsel %vm252, %v236, %v239
        %v257 = vsel %vm255, %v245, 2102212464
        %v258 = vsel %vm254, %v242, %v257
        %v259 = vsel %vm253, %v256, %v258
        %v260 = vsel %vm252, %v239, %v242
        %v261 = vsel %vm255, %v248, 920167782
        %v262 = vsel %vm254, %v245, %v261
        %v263 = vsel %vm253, %v260, %v262
        %v264 = vsel %vm252, %v242, %v245
        %v265 = vsel %vm255, %v251, 1326507024
        %v266 = vsel %vm254, %v248, %v265
        %v267 = vsel %vm253, %v264, %v266
        %v268 = vshll.u32 %v228, 8
        %v269 = vmul.u32.u64.compose %v268, %v267
        %v270 = vextract.low.u32 %v269
        %v271 = vextract.high.u32 %v269
        %v272 = vmul.u32.u64.compose %v268, %v263
        %v273 = vextract.low.u32 %v272
        %v274 = vextract.high.u32 %v272
        %v275 = vmul.u32 %v268, %v259
        %v276 = vadd.s32 %v271, %v273
        %vm277 = vc.u32 %v271, %v273
        %v278 = vadd.s32 %v274, 1
        %v279 = vsel %vm277, %v278, %v274
        %v280 = vadd.s32 %v275, %v279
        %v281 = vadd.s32 %v280, 536870912
        %v282 = vshrl.u32 %v281, 30
        %v283 = vshll.u32 %v282, 30
        %v284 = vsub.s32 %v280, %v283
        %vm285 = vcmp.lt.s32.totalorder %v284, 0
        %v286 = vsub.s32 0, %v284
        %v287 = vsel %vm285, %v286, %v284
        %v288 = vclz %v287
        %v289 = vsub.s32 %v288, 2
        %vm290 = vcmp.gt.s32.totalorder 0, %v289
        %v291 = vsel %vm290, 0, %v289
        %v292 = vsub.s32 32, %v291
        %v293 = vshll.u32 %v284, %v291
        %v294 = vshrl.u32 %v276, %v292
        %v295 = vor.u32 %v293, %v294
        %v296 = vsub.s32 4294967266, %v291
        %v297 = vadd.s32 %v296, 127
        %v298 = vshll.u32 %v297, 23
        %v299 = vor.u32 4788187, %v298
        %v300 = vand.u32 2147483647, %v299
        %v302 = vcvt.s32.f32 %v295
        %v303 = vmul.f32 %v302, %v300
        %v304 = vxor.u32 %v303, 2147483648
        %v305 = vsel %vm222, %v304, %v303
        %v306 = vsub.s32 4, %v282
        %v307 = vsel %vm222, %v306, %v282
        %v308 = vsel %vm221, %v218, %v305
        %v309 = vsel %vm221, 0, %v307
        %v310 = vcosq.f32.pop %v308
        %v311 = vsinq.f32.pop %v308
        %vm312 = vweird.f32 %v218
        %v313 = vadd.s32 %v309, 3
        %v314 = vand.u32 %v313, 3
        %vm315 = vcmp.lt.s32.totalorder %v314, 2
        %vm316 = vcmp.eq.s32.totalorder %v314, 0
        %v317 = vxor.u32 %v311, 2147483648
        %v318 = vsel %vm316, %v310, %v317
        %vm319 = vcmp.eq.s32.totalorder %v314, 2
        %v320 = vxor.u32 %v310, 2147483648
        %v321 = vsel %vm319, %v320, %v311
        %v322 = vsel %vm315, %v318, %v321
        %v323 = vsel %vm312, nan, %v322
        %v324 = vand.u32 2147483647, %v219
        %vm325 = vcmp.le.f32.partialorder %v324, 0.7853982
        %vm326 = vcmp.lt.s32.totalorder %v219, 0
        %v327 = vand.u32 %v219, 2139095040
        %v328 = vshrl.u32 %v327, 23
        %v329 = vsub.s32 %v328, 127
        %v330 = vand.u32 2147483647, %v219
        %v331 = vand.u32 %v330, 8388607
        %v332 = vor.u32 %v331, 8388608
        %v333 = vsub.s32 0, %v332
        %v334 = vadd.s32 %v329, 1
        %vm335 = vcmp.gt.s32.totalorder %v334, 0
        %v336 = vsel %vm335, %v334, 0
        %v337 = vshrl.u32 %v336, 5
        %v338 = vand.u32 %v336, 31
        %v339 = vsub.s32 32, %v338
        %v340 = vshrl.u32 683565275, %v339
        %v341 = vshll.u32 683565275, %v338
        %v342 = vshrl.u32 2475754826, %v339
        %v343 = vor.u32 %v341, %v342
        %v344 = vshll.u32 2475754826, %v338
        %v345 = vshrl.u32 2131351028, %v339
        %v346 = vor.u32 %v344, %v345
        %v347 = vshll.u32 2131351028, %v338
        %v348 = vshrl.u32 2102212464, %v339
        %v349 = vor.u32 %v347, %v348
        %v350 = vshll.u32 2102212464, %v338
        %v351 = vshrl.u32 920167782, %v339
        %v352 = vor.u32 %v350, %v351
        %v353 = vshll.u32 920167782, %v338
        %v354 = vshrl.u32 1326507024, %v339
        %v355 = vor.u32 %v353, %v354
        %vm356 = vcmp.lt.s32.totalorder %v337, 1
        %vm357 = vcmp.lt.s32.totalorder %v337, 2
        %vm358 = vcmp.lt.s32.totalorder %v337, 3
        %vm359 = vcmp.lt.s32.totalorder %v337, 4
        %v360 = vsel %vm356, %v340, %v343
        %v361 = vsel %vm359, %v349, 2102212464
        %v362 = vsel %vm358, %v346, %v361
        %v363 = vsel %vm357, %v360, %v362
        %v364 = vsel %vm356, %v343, %v346
        %v365 = vsel %vm359, %v352, 920167782
        %v366 = vsel %vm358, %v349, %v365
        %v367 = vsel %vm357, %v364, %v366
        %v368 = vsel %vm356, %v346, %v349
        %v369 = vsel %vm359, %v355, 1326507024
        %v370 = vsel %vm358, %v352, %v369
        %v371 = vsel %vm357, %v368, %v370
        %v372 = vshll.u32 %v332, 8
        %v373 = vmul.u32.u64.compose %v372, %v371
        %v374 = vextract.low.u32 %v373
        %v375 = vextract.high.u32 %v373
        %v376 = vmul.u32.u64.compose %v372, %v367
        %v377 = vextract.low.u32 %v376
        %v378 = vextract.high.u32 %v376
        %v379 = vmul.u32 %v372, %v363
        %v380 = vadd.s32 %v375, %v377
        %vm381 = vc.u32 %v375, %v377
        %v382 = vadd.s32 %v378, 1
        %v383 = vsel %vm381, %v382, %v378
        %v384 = vadd.s32 %v379, %v383
        %v385 = vadd.s32 %v384, 536870912
        %v386 = vshrl.u32 %v385, 30
        %v387 = vshll.u32 %v386, 30
        %v388 = vsub.s32 %v384, %v387
        %vm389 = vcmp.lt.s32.totalorder %v388, 0
        %v390 = vsub.s32 0, %v388
        %v391 = vsel %vm389, %v390, %v388
        %v392 = vclz %v391
        %v393 = vsub.s32 %v392, 2
        %vm394 = vcmp.gt.s32.totalorder 0, %v393
        %v395 = vsel %vm394, 0, %v393
        %v396 = vsub.s32 32, %v395
        %v397 = vshll.u32 %v388, %v395
        %v398 = vshrl.u32 %v380, %v396
        %v399 = vor.u32 %v397, %v398
        %v400 = vsub.s32 4294967266, %v395
        %v401 = vadd.s32 %v400, 127
        %v402 = vshll.u32 %v401, 23
        %v403 = vor.u32 4788187, %v402
        %v404 = vand.u32 2147483647, %v403
        %v406 = vcvt.s32.f32 %v399
        %v407 = vmul.f32 %v406, %v404
        %v408 = vxor.u32 %v407, 2147483648
        %v409 = vsel %vm326, %v408, %v407
        %v410 = vsub.s32 4, %v386
        %v411 = vsel %vm326, %v410, %v386
        %v412 = vsel %vm325, %v219, %v409
        %v413 = vsel %vm325, 0, %v411
        %v414 = vcosq.f32.pop %v412
        %v415 = vsinq.f32.pop %v412
        %vm416 = vweird.f32 %v219
        %v417 = vadd.s32 %v413, 3
        %v418 = vand.u32 %v417, 3
        %vm419 = vcmp.lt.s32.totalorder %v418, 2
        %vm420 = vcmp.eq.s32.totalorder %v418, 0
        %v421 = vxor.u32 %v415, 2147483648
        %v422 = vsel %vm420, %v414, %v421
        %vm423 = vcmp.eq.s32.totalorder %v418, 2
        %v424 = vxor.u32 %v414, 2147483648
        %v425 = vsel %vm423, %v424, %v415
        %v426 = vsel %vm419, %v422, %v425
        %v427 = vsel %vm416, nan, %v426
        %v428 = vmul.f32 %v323, %v323
        %v429 = vmul.f32 %v427, %v427
        %v431 = vlaneseq
        %v432 = vshrl.u32 %v431, 7
        %v433 = vsub.s32 0, %v432
        %v434 = vrot.slane %v211, %v433
        %v436 = vmul.f32 %v428, %v434
        %v437 = vmul.f32 %v429, %v434
        %v438 = vadd.f32 %v207, %v436
        %v439 = vadd.f32 %v208, %v437
        %v440 = vld [vmem:[%s2] sm:$0xff]
        %vm441 = vcmask 64512
        %v443 = vsel %vm441, %v438, 0
        %v446 = vsel %vm441, %v439, 0
        %448 = vmatprep.subr.mxu0 0.0
        %449 = vmatpush1.msra.mxu0 %v440
        %450 = vmatprep.subr.mxu0 0.0
        %451 = vmatpush1.msra.mxu0 0.0
        %452 = vmatprep.subr.mxu0 0.0
        %453 = vmatpush1.msra.mxu0 0.0
        %454 = vmatprep.subr.mxu0 0.0
        %455 = vmatpush1.msra.mxu0 0.0
        %456 = vmatprep.subr.mxu0 0.0
        %457 = vmatpush1.msra.mxu0 0.0
        %458 = vmatprep.subr.mxu0 0.0
        %459 = vmatpush1.msra.mxu0 0.0
        %460 = vmatprep.subr.mxu0 0.0
        %461 = vmatpush1.msra.mxu0 0.0
        %462 = vmatprep.subr.mxu0 0.0
        %463 = vmatpush1.msra.mxu0 0.0
        %464 = vmatprep.subr.mxu0 0.0
        %465 = vmatpush1.msra.mxu0 0.0
        %466 = vmatprep.subr.mxu0 0.0
        %467 = vmatpush1.msra.mxu0 0.0
        %468 = vmatprep.subr.mxu0 0.0
        %469 = vmatpush1.msra.mxu0 0.0
        %470 = vmatprep.subr.mxu0 0.0
        %471 = vmatpush1.msra.mxu0 0.0
        %472 = vmatprep.subr.mxu0 0.0
        %473 = vmatpush1.msra.mxu0 0.0
        %474 = vmatprep.subr.mxu0 0.0
        %475 = vmatpush1.msra.mxu0 0.0
        %476 = vmatprep.subr.mxu0 0.0
        %477 = vmatpush1.msra.mxu0 0.0
        %478 = vmatprep.subr.mxu0 0.0
        %479 = vmatpush1.msra.mxu0 0.0
        %480 = vmatprep.subr.mxu0 0.0
        %481 = vmatpush1.msra.mxu0 0.0
        %482 = vmatprep.subr.mxu0 0.0
        %483 = vmatpush1.msra.mxu0 0.0
        %484 = vmatprep.subr.mxu0 0.0
        %485 = vmatpush1.msra.mxu0 0.0
        %486 = vmatprep.subr.mxu0 0.0
        %487 = vmatpush1.msra.mxu0 0.0
        %488 = vmatprep.subr.mxu0 0.0
        %489 = vmatpush1.msra.mxu0 0.0
        %490 = vmatprep.subr.mxu0 0.0
        %491 = vmatpush1.msra.mxu0 0.0
        %492 = vmatprep.subr.mxu0 0.0
        %493 = vmatpush1.msra.mxu0 0.0
        %494 = vmatprep.subr.mxu0 0.0
        %495 = vmatpush1.msra.mxu0 0.0
        %496 = vmatprep.subr.mxu0 0.0
        %497 = vmatpush1.msra.mxu0 0.0
        %498 = vmatprep.subr.mxu0 0.0
        %499 = vmatpush1.msra.mxu0 0.0
        %500 = vmatprep.subr.mxu0 0.0
        %501 = vmatpush1.msra.mxu0 0.0
        %502 = vmatprep.subr.mxu0 0.0
        %503 = vmatpush1.msra.mxu0 0.0
        %504 = vmatprep.subr.mxu0 0.0
        %505 = vmatpush1.msra.mxu0 0.0
        %506 = vmatprep.subr.mxu0 0.0
        %507 = vmatpush1.msra.mxu0 0.0
        %508 = vmatprep.subr.mxu0 0.0
        %509 = vmatpush1.msra.mxu0 0.0
        %510 = vmatprep.subr.mxu0 0.0
        %511 = vmatpush1.msra.mxu0 0.0
        %512 = vmatprep.mubr.f32.mxu0 0.0
        %513 = vmatmul.mubr.f32.gmra.mrb[0].mxu0 %v443
        %v514 = vpop.f32.mrb[0].mxu0
        %v515 = vadd.f32 0.0, %v514
        %v516 = vpop.f32.mrb[0].mxu0
        %517 = vmatprep.mubr.f32.mxu0 0.0
        %518 = vmatmul.mubr.f32.gmra.mrb[0].mxu0 %v446
        %v519 = vpop.f32.mrb[0].mxu0
        %v520 = vadd.f32 0.0, %v519
        %v521 = vpop.f32.mrb[0].mxu0
        %522 = vdwg.mxu0
        %vm523 = vcmask 261120
        %524 = vst.msk [vmem:[%s194] sm:$0xff] %vm523, %v515
        %525 = vst.msk [vmem:[%s194 + $0x8] sm:$0xff] %vm523, %v520
        %528 = vrot.lane.b32.xlu0 %v515, 96
        %v529 = vpop.permute.xlu0 %528
        %530 = vrot.lane.b32.xlu0 %v520, 96
        %v531 = vpop.permute.xlu0 %530
        %534 = vst.msk [vmem:[%s201] sm:$0xff] %vm523, %v529
        %535 = vst.msk [vmem:[%s201 + $0x8] sm:$0xff] %vm523, %v531
        %s536 = sand.u32 %s98, 1
        %s537 = scalar_lea.sflag [#allocation3], %s536
        %s538 = sand.u32 %s98, 1
        %s539 = smul.addr %s538, 16
        %s540 = scalar_lea.vmem [#allocation2], %s539
        %s541 = sand.u32 %s124, 1
        %s542 = scalar_lea.sflag [#allocation5], %s541
        %s543 = sand.u32 %s124, 1
        %s544 = smul.addr %s543, 16
        %s545 = scalar_lea.vmem [#allocation4], %s544
        // Predicated region
        $region33: #{tpu_custom_call.1} parent=31 // pred_check
          %p546 = pneg %p108
        $region34: #{tpu_custom_call.1} parent=31 // pred_check_branch
          %548 = sbr.rel (%p546) target = $region36
        $region35: #{tpu_custom_call.1} parent=31 // pred_region
          %s550 = ssub.s32 256, 256
          %551 = vsyncadd %s537, %s550
          %s552 = smul.addr %s22, 2
          %s553 = smul.addr %s552, 128
          %s554 = scalar_lea.hbm %s3, %s553
          %s555 = sshll.u32 %s540, 4
          %s556 = int_to_ptr.vmem [resolvable:$true] %s555
          %561 = dma.vmem_to_hbm [thread:$0]  %s556, 256, %s554, %s537, 128, 128, 8
        $region36: #{tpu_custom_call.1} parent=31 // pred_fallthru
          _
        // Predicated region
        $region37: #{tpu_custom_call.1} parent=31 // pred_check
          %p562 = pneg %p134
        $region38: #{tpu_custom_call.1} parent=31 // pred_check_branch
          %564 = sbr.rel (%p562) target = $region40
        $region39: #{tpu_custom_call.1} parent=31 // pred_region
          %s566 = ssub.s32 256, 256
          %567 = vsyncadd %s542, %s566
          %s568 = smul.addr %s22, 2
          %s569 = smul.addr %s568, 128
          %s570 = scalar_lea.hbm %s4, %s569
          %s571 = sshll.u32 %s545, 4
          %s572 = int_to_ptr.vmem [resolvable:$true] %s571
          %577 = dma.vmem_to_hbm [thread:$0]  %s572, 256, %s570, %s542, 128, 128, 8
        $region40: #{tpu_custom_call.1} parent=31 // pred_fallthru
          _
      $region32: #{tpu_custom_call.1} parent=5 // pred_fallthru
        _
      %p578 = scmp.le.s32.totalorder 2, %s17
      // Predicated region
      $region41: #{tpu_custom_call.1} parent=5 // pred_check
        %p579 = pneg %p578
      $region42: #{tpu_custom_call.1} parent=5 // pred_check_branch
        %581 = sbr.rel (%p579) target = $region44
      $region43: #{tpu_custom_call.1} parent=5 // pred_region
        %s582 = ssub.s32 %s17, 2
        // Predicated region
        $region45: #{tpu_custom_call.1} parent=43 // pred_check
          %p583 = pneg %p114
        $region46: #{tpu_custom_call.1} parent=43 // pred_check_branch
          %585 = sbr.rel (%p583) target = $region48
        $region47: #{tpu_custom_call.1} parent=43 // pred_region
          %s586 = sand.u32 %s99, 1
          %s587 = scalar_lea.sflag [#allocation3], %s586
          %s588 = sand.u32 %s99, 1
          %s589 = smul.addr %s588, 16
          %s590 = scalar_lea.vmem [#allocation2], %s589
          %591 = dma.done %s587, 256
        $region48: #{tpu_custom_call.1} parent=43 // pred_fallthru
          _
        // Predicated region
        $region49: #{tpu_custom_call.1} parent=43 // pred_check
          %p592 = pneg %p140
        $region50: #{tpu_custom_call.1} parent=43 // pred_check_branch
          %594 = sbr.rel (%p592) target = $region52
        $region51: #{tpu_custom_call.1} parent=43 // pred_region
          %s595 = sand.u32 %s125, 1
          %s596 = scalar_lea.sflag [#allocation5], %s595
          %s597 = sand.u32 %s125, 1
          %s598 = smul.addr %s597, 16
          %s599 = scalar_lea.vmem [#allocation4], %s598
          %600 = dma.done %s596, 256
        $region52: #{tpu_custom_call.1} parent=43 // pred_fallthru
          _
      $region44: #{tpu_custom_call.1} parent=5 // pred_fallthru
        _
    $region6: #{tpu_custom_call.1} parent=1 // loop_footer
      %s21 = sadd.s32 1, %s17
    $region7: #{tpu_custom_call.1} parent=1 // loop_footer_branch
      %16 = sbr.rel target = $region3
    $region8: #{tpu_custom_call.1} parent=1 // loop_exit
      _
    %601 = vsyncpa [#allocation3], 1
    %s602 = scalar_lea.sflag [#allocation3], 1
    %603 = vsyncpa %s602, 1
    %604 = vsyncpa [#allocation5], 1
    %s605 = scalar_lea.sflag [#allocation5], 1
    %606 = vsyncpa %s605, 1

</llo_original>
